<compile_context>
chip_gen: v5e
topology: v5e:2x2
jax: 0.10.0
libtpu: 0.0.40
codegen_flags: <defaults>
</compile_context>

<pallas_src>
import math

import jax
import jax.numpy as jnp
from jax.experimental import pallas as pl
from jax.experimental.pallas import tpu as pltpu


def _modulator_kernel(x_ref, m_ref, w1_ref, b1_ref, w2_ref, b2_ref, o_ref):
    # x_ref / m_ref / o_ref: (C, TILE_HW) pixel blocks (lane axis = pixels).
    # w1 / w2: (Cout, Cin) conv weights in the activation dtype.
    # b1 / b2: (Cout, 1) f32.
    m = m_ref[...]                                     # native dtype into MXU
    h = jnp.dot(w1_ref[...], m, preferred_element_type=jnp.float32) + b1_ref[...]
    h = jnp.maximum(h, 0.0)                            # ReLU (f32)
    # Feed h back to the MXU in the weight dtype (bf16 path when activations
    # are bf16; no-op cast for f32).
    y = jnp.dot(w2_ref[...], h.astype(w2_ref.dtype),
                preferred_element_type=jnp.float32) + b2_ref[...]
    # Final multiply in the output dtype (bf16 VPU on v6e/v7x, f32 otherwise).
    o_ref[...] = x_ref[...] * y.astype(o_ref.dtype)


def _round_up(x, m):
    return ((x + m - 1) // m) * m


def _plan(B, C, HW, in_itemsize, w_itemsize):
    """Pick TILE_HW (multiple of 128 or full HW) and a matching vmem limit."""
    # --- generation-aware scoped-VMEM budget -------------------------------
    try:
        phys = int(pltpu.get_tpu_info().vmem_capacity_bytes)
    except Exception:  # pragma: no cover - conservative fallback
        phys = 64 << 20
    if phys <= (64 << 20):
        budget = 40 << 20            # v7x: 64 MiB/TC physical -> leave headroom
    else:
        budget = 64 << 20            # v5e/v6e: 128 MiB physical

    # VMEM-resident weights: 2 weights x 2 pipeline buffers (+ biases, f32).
    weight_bytes = 4 * C * C * w_itemsize + 4 * C * 4

    # Per lane-column cost:
    #   3 pixel streams (x, m, out) x 2 buffers in the input dtype
    # + h, y f32 intermediates (+1 column of f32 slack for fused temporaries).
    per_col = C * (6 * in_itemsize + 3 * 4)

    avail = budget - weight_bytes - (4 << 20)          # scheduler headroom
    tile_budget = max(128, (max(avail, per_col * 128) // per_col) // 128 * 128)

    # Cap individual (C, tile) input blocks at ~8 MiB.
    tile_cap = max(128, ((8 << 20) // (C * in_itemsize)) // 128 * 128)

    # Occupancy: make sure both v7x TensorCores get several grid steps and the
    # pipeline has something to overlap (min ~8 steps when the shape allows).
    min_steps = min(8, B * pl.cdiv(HW, 128))
    tiles_per_b = max(1, -(-min_steps // B))
    tile_occ = max(128, _round_up(pl.cdiv(HW, tiles_per_b), 128))

    tile = min(tile_budget, tile_cap, tile_occ)
    if tile >= HW:
        tile = HW                    # full last dim (allowed even if not %128)

    # Exact-ish usage for the chosen tile (streams + intermediates + weights).
    vmem_needed = 6 * C * tile * in_itemsize + 3 * C * tile * 4 + weight_bytes
    vmem_limit = int(min(budget, max(int(1.5 * vmem_needed) + (4 << 20), 16 << 20)))
    return tile, vmem_limit


@jax.jit
def modulator_v3(inp, modulation, w1, b1, w2, b2):
    """inp, modulation: NCHW.  w1, w2: [Cout, Cin] (== conv.weight[:, :, 0, 0]).
    b1, b2: [Cout]."""
    B, C, H, W = inp.shape
    HW = H * W

    # The module uses two square C->C 1x1 convs; the BlockSpecs rely on it.
    assert modulation.shape == inp.shape, "input/modulation shape mismatch"
    assert w1.shape == (C, C) and w2.shape == (C, C), "convs must be square CxC"
    assert b1.shape == (C,) and b2.shape == (C,), "bias shape mismatch"

    # Keep weights in the activation dtype (bf16 MXU path for bf16 inputs);
    # biases stay f32 and are added to the f32 accumulator.
    act_dtype = inp.dtype
    w1c = w1.astype(act_dtype)
    w2c = w2.astype(act_dtype)
    b1c = b1.astype(jnp.float32).reshape(C, 1)
    b2c = b2.astype(jnp.float32).reshape(C, 1)

    in_itemsize = jnp.dtype(act_dtype).itemsize
    w_itemsize = jnp.dtype(act_dtype).itemsize
    tile, vmem_limit = _plan(B, C, HW, in_itemsize, w_itemsize)

    # NCHW -> [B, C, H*W] is a pure reshape: no data movement, no extra HBM pass.
    x = inp.reshape(B, C, HW)
    m = modulation.reshape(B, C, HW)

    grid = (B, pl.cdiv(HW, tile))

    pix_spec = pl.BlockSpec((None, C, tile), lambda b, i: (b, 0, i))
    w_spec = pl.BlockSpec((C, C), lambda b, i: (0, 0))
    bias_spec = pl.BlockSpec((C, 1), lambda b, i: (0, 0))

    out = pl.pallas_call(
        _modulator_kernel,
        out_shape=jax.ShapeDtypeStruct((B, C, HW), inp.dtype),
        grid_spec=pltpu.PrefetchScalarGridSpec(
            num_scalar_prefetch=0,
            grid=grid,
            in_specs=[pix_spec, pix_spec, w_spec, bias_spec, w_spec, bias_spec],
            out_specs=pix_spec,
        ),
        compiler_params=pltpu.CompilerParams(
            dimension_semantics=("parallel", "parallel"),
            vmem_limit_bytes=vmem_limit,
        ),
    )(x, m, w1c, b1c, w2c, b2c)

    return out.reshape(B, C, H, W)


def _reference(inp, modulation, w1, b1, w2, b2):
    # Plain-JAX reference of the PyTorch forward (1x1 conv == channel matmul).
    B, C, H, W = inp.shape
    m = modulation.reshape(B, C, H * W)
    h = jnp.maximum(jnp.einsum("oc,bcp->bop", w1, m) + b1[None, :, None], 0.0)
    y = jnp.einsum("oc,bcp->bop", w2, h) + b2[None, :, None]
    return inp * y.reshape(B, C, H, W)


if __name__ == "__main__":
    B, C, H, W = 2, 32, 16, 16

    key = jax.random.PRNGKey(0)
    k_in, k_mod, k_w1, k_w2 = jax.random.split(key, 4)

    inp = jax.random.normal(k_in, (B, C, H, W), dtype=jnp.float32)
    modulation = jax.random.normal(k_mod, (B, C, H, W), dtype=jnp.float32)

    # Module init: weight ~ N(0, sqrt(2/(k*k*Cout))) with k=1, bias = 0.
    # Weights kept in native conv orientation [Cout, Cin].
    std = math.sqrt(2.0 / C)
    w1 = std * jax.random.normal(k_w1, (C, C), dtype=jnp.float32)
    b1 = jnp.zeros((C,), dtype=jnp.float32)
    w2 = std * jax.random.normal(k_w2, (C, C), dtype=jnp.float32)
    b2 = jnp.zeros((C,), dtype=jnp.float32)

    out = modulator_v3(inp, modulation, w1, b1, w2, b2)
    out = jax.block_until_ready(out)

    ref = _reference(inp, modulation, w1, b1, w2, b2)
    assert out.shape == (B, C, H, W)
    assert jnp.allclose(out, ref, atol=1e-5, rtol=1e-5), "mismatch vs reference"

    print("KERNEL_OK")
</pallas_src>

<mosaic_0001>
module attributes {stable_mosaic.version = 11 : i64} {
  func.func @_modulator_kernel(%arg0: i32, %arg1: i32, %arg2: memref<1x32x128xf32, #tpu.memory_space<vmem>>, %arg3: memref<1x32x128xf32, #tpu.memory_space<vmem>>, %arg4: memref<32x32xf32, #tpu.memory_space<vmem>>, %arg5: memref<32x1xf32, #tpu.memory_space<vmem>>, %arg6: memref<32x32xf32, #tpu.memory_space<vmem>>, %arg7: memref<32x1xf32, #tpu.memory_space<vmem>>, %arg8: memref<1x32x128xf32, #tpu.memory_space<vmem>>) attributes {dimension_semantics = [#tpu.dimension_semantics<parallel>, #tpu.dimension_semantics<parallel>], iteration_bounds = array<i64: 2, 2>, scalar_prefetch = 0 : i64, scratch_operands = 0 : i64, tpu.core_type = #tpu.core_type<tc>, window_params = [{transform_indices = @transform_0, window_bounds = array<i64: 1, 32, 128>}, {transform_indices = @transform_1, window_bounds = array<i64: 1, 32, 128>}, {pipeline_mode = #tpu.pipeline_mode<synchronous>, transform_indices = @transform_2, window_bounds = array<i64: 32, 32>}, {pipeline_mode = #tpu.pipeline_mode<synchronous>, transform_indices = @transform_3, window_bounds = array<i64: 32, 1>}, {pipeline_mode = #tpu.pipeline_mode<synchronous>, transform_indices = @transform_4, window_bounds = array<i64: 32, 32>}, {pipeline_mode = #tpu.pipeline_mode<synchronous>, transform_indices = @transform_5, window_bounds = array<i64: 32, 1>}, {transform_indices = @transform_6, window_bounds = array<i64: 1, 32, 128>}]} {
    %c0 = arith.constant 0 : index
    %c0_0 = arith.constant 0 : index
    %c0_1 = arith.constant 0 : index
    %0 = vector.load %arg3[%c0, %c0_0, %c0_1] : memref<1x32x128xf32, #tpu.memory_space<vmem>>, vector<1x32x128xf32>
    %1 = vector.shape_cast %0 : vector<1x32x128xf32> to vector<32x128xf32>
    %c0_2 = arith.constant 0 : index
    %c0_3 = arith.constant 0 : index
    %2 = vector.load %arg4[%c0_2, %c0_3] : memref<32x32xf32, #tpu.memory_space<vmem>>, vector<32x32xf32>
    %cst = arith.constant dense<0.000000e+00> : vector<32x128xf32>
    %3 = tpu.matmul %2, %1, %cst {dimension_numbers = #tpu.dot_dimension_numbers<[1], [0], [0], [1], [0, 0, 1, 1], [], []>} : vector<32x32xf32>, vector<32x128xf32>, vector<32x128xf32> -> vector<32x128xf32>
    %c0_4 = arith.constant 0 : index
    %c0_5 = arith.constant 0 : index
    %4 = vector.load %arg5[%c0_4, %c0_5] : memref<32x1xf32, #tpu.memory_space<vmem>>, vector<32x1xf32>
    %5 = vector.broadcast %4 : vector<32x1xf32> to vector<32x128xf32>
    %6 = arith.addf %3, %5 : vector<32x128xf32>
    %cst_6 = arith.constant 0.000000e+00 : f32
    %7 = vector.broadcast %cst_6 : f32 to vector<32x128xf32>
    %8 = arith.maximumf %6, %7 : vector<32x128xf32>
    %c0_7 = arith.constant 0 : index
    %c0_8 = arith.constant 0 : index
    %9 = vector.load %arg6[%c0_7, %c0_8] : memref<32x32xf32, #tpu.memory_space<vmem>>, vector<32x32xf32>
    %cst_9 = arith.constant dense<0.000000e+00> : vector<32x128xf32>
    %10 = tpu.matmul %9, %8, %cst_9 {dimension_numbers = #tpu.dot_dimension_numbers<[1], [0], [0], [1], [0, 0, 1, 1], [], []>} : vector<32x32xf32>, vector<32x128xf32>, vector<32x128xf32> -> vector<32x128xf32>
    %c0_10 = arith.constant 0 : index
    %c0_11 = arith.constant 0 : index
    %11 = vector.load %arg7[%c0_10, %c0_11] : memref<32x1xf32, #tpu.memory_space<vmem>>, vector<32x1xf32>
    %12 = vector.broadcast %11 : vector<32x1xf32> to vector<32x128xf32>
    %13 = arith.addf %10, %12 : vector<32x128xf32>
    %c0_12 = arith.constant 0 : index
    %c0_13 = arith.constant 0 : index
    %c0_14 = arith.constant 0 : index
    %14 = vector.load %arg2[%c0_12, %c0_13, %c0_14] : memref<1x32x128xf32, #tpu.memory_space<vmem>>, vector<1x32x128xf32>
    %15 = vector.shape_cast %14 : vector<1x32x128xf32> to vector<32x128xf32>
    %16 = arith.mulf %15, %13 : vector<32x128xf32>
    %c0_15 = arith.constant 0 : index
    %c0_16 = arith.constant 0 : index
    %c0_17 = arith.constant 0 : index
    %17 = vector.load %arg8[%c0_15, %c0_16, %c0_17] : memref<1x32x128xf32, #tpu.memory_space<vmem>>, vector<1x32x128xf32>
    %18 = vector.shape_cast %17 : vector<1x32x128xf32> to vector<32x128xf32>
    %19 = vector.shape_cast %16 : vector<32x128xf32> to vector<1x32x128xf32>
    tpu.vector_store %arg8[%c0_15, %c0_16, %c0_17], %19 {strides = array<i32>} : memref<1x32x128xf32, #tpu.memory_space<vmem>>, vector<1x32x128xf32>,
    return
  }
  func.func @transform_0(%arg0: i32, %arg1: i32) -> (i32, i32, i32) {
    %c0_i32 = arith.constant 0 : i32
    %c0_i32_0 = arith.constant 0 : i32
    return %arg0, %c0_i32, %arg1 : i32, i32, i32
  }
  func.func @transform_1(%arg0: i32, %arg1: i32) -> (i32, i32, i32) {
    %c0_i32 = arith.constant 0 : i32
    %c0_i32_0 = arith.constant 0 : i32
    return %arg0, %c0_i32, %arg1 : i32, i32, i32
  }
  func.func @transform_2(%arg0: i32, %arg1: i32) -> (i32, i32) {
    %c0_i32 = arith.constant 0 : i32
    %c0_i32_0 = arith.constant 0 : i32
    %c0_i32_1 = arith.constant 0 : i32
    return %c0_i32, %c0_i32_0 : i32, i32
  }
  func.func @transform_3(%arg0: i32, %arg1: i32) -> (i32, i32) {
    %c0_i32 = arith.constant 0 : i32
    %c0_i32_0 = arith.constant 0 : i32
    %c0_i32_1 = arith.constant 0 : i32
    return %c0_i32, %c0_i32_0 : i32, i32
  }
  func.func @transform_4(%arg0: i32, %arg1: i32) -> (i32, i32) {
    %c0_i32 = arith.constant 0 : i32
    %c0_i32_0 = arith.constant 0 : i32
    %c0_i32_1 = arith.constant 0 : i32
    return %c0_i32, %c0_i32_0 : i32, i32
  }
  func.func @transform_5(%arg0: i32, %arg1: i32) -> (i32, i32) {
    %c0_i32 = arith.constant 0 : i32
    %c0_i32_0 = arith.constant 0 : i32
    %c0_i32_1 = arith.constant 0 : i32
    return %c0_i32, %c0_i32_0 : i32, i32
  }
  func.func @transform_6(%arg0: i32, %arg1: i32) -> (i32, i32, i32) {
    %c0_i32 = arith.constant 0 : i32
    %c0_i32_0 = arith.constant 0 : i32
    return %arg0, %c0_i32, %arg1 : i32, i32, i32
  }
}

</mosaic_0001>

<llo_original>
// kernel: modulator_v3.1
$region0: #{modulator_v3.1}
  #allocation0 [shape = 'u32[]', space=smem, size = 0x4, offset = 0x4, fixed_abs, tag = 'smem constant byte address 0x4 - core index']
  #allocation1 [shape = 'u32[72,128]{1,0:T(1,128)}', space=vmem, size = 0x9000, scoped, tag = 'internal scratch']
  %s0 = inlined_call_operand.vmem [shape: f32[2,32,256], index: 0, kind: input, shape index: {}]
  %s1 = inlined_call_operand.vmem [shape: f32[2,32,256], index: 1, kind: input, shape index: {}]
  %s2 = inlined_call_operand.vmem [shape: f32[32,32], index: 2, kind: input, shape index: {}]
  %s3 = inlined_call_operand.vmem [shape: f32[32,1], index: 3, kind: input, shape index: {}]
  %s4 = inlined_call_operand.vmem [shape: f32[32,32], index: 4, kind: input, shape index: {}]
  %s5 = inlined_call_operand.vmem [shape: f32[32,1], index: 5, kind: input, shape index: {}]
  %s6 = inlined_call_operand.vmem [shape: f32[2,32,256], index: 6, kind: output, shape index: {}]
  %s7 = sld [smem:[#allocation0]]
  $region167: #{modulator_v3.1} parent=0
    _
  %s9 = ssub.s32 1, %s7
  %s10 = scalar_select 0, %s9, %s7
  $region1: #{modulator_v3.1} parent=0
    #allocation2 [shape = 'u8[32768]{0}', space=vmem, size = 0x8000, scoped, tag = 'input window, operand 0']
    #allocation3 [shape = 'u8[32768]{0}', space=vmem, size = 0x8000, scoped, tag = 'input window, operand 1']
    #allocation4 [shape = 'u8[32768]{0}', space=vmem, size = 0x8000, scoped, tag = 'output window, operand 0']
    loop: start=0, step=1, limit=6
    $region2: #{modulator_v3.1} parent=1 // loop_pre_header
      _
    $region3: #{modulator_v3.1} parent=1 // loop_header
      %s12 = sphi 0, %s16
      %p13 = scmp.ge.s32.totalorder %s12, 6
      %s19 = sphi 0, %s31
      %s20 = sphi 0, %s27
      %s21 = sphi 0, %s19
      %s22 = sphi 0, %s20
      %s23 = sphi 0, %s21
      %s24 = sphi 0, %s22
      %s36 = sphi 0, %s38
      %s39 = sphi 0, %s36
      %s40 = sphi 0, %s39
      %s56 = sphi 0, %s40
      %s64 = sphi 0, %s66
      %s67 = sphi 0, %s64
      %s68 = sphi 0, %s67
      %s84 = sphi 0, %s68
      %s88 = sphi 0, %s88
      %s90 = sphi 0, %s88
      %s91 = sphi 0, %s90
      %s105 = sphi 0, %s91
      %s109 = sphi 0, %s109
      %s111 = sphi 0, %s109
      %s112 = sphi 0, %s111
      %s126 = sphi 0, %s112
      %s130 = sphi 0, %s130
      %s132 = sphi 0, %s130
      %s133 = sphi 0, %s132
      %s147 = sphi 0, %s133
      %s151 = sphi 0, %s151
      %s153 = sphi 0, %s151
      %s154 = sphi 0, %s153
      %s168 = sphi 0, %s154
      %s176 = sphi 0, %s178
      %s179 = sphi 0, %s176
      %s180 = sphi 0, %s179
      %s196 = sphi 0, %s180
    $region4: #{modulator_v3.1} parent=1 // loop_header_branch
      %15 = sbr.rel (%p13) target = $region8
    $region5: #{modulator_v3.1} parent=1 // loop_body
      %s17 = ssub.s32 %s12, 1
      %s18 = ssub.s32 %s12, 2
      %s25 = sadd.s32 1, %s20
      %p26 = scmp.ge.s32.totalorder %s25, 2
      %s27 = scalar_select %p26, 0, %s25
      %s28 = sadd.s32 1, %s19
      %s29 = scalar_select %p26, %s28, %s19
      %p30 = scmp.ge.s32.totalorder %s29, 2
      %s31 = scalar_select %p30, 0, %s29
      %s32 = ssub.s32 %s19, %s31
      %s33 = ssub.s32 %s20, %s27
      %s34 = sor.u32 %s32, %s33
      %p35 = scmp.eq.s32.totalorder %s34, 0
      %s37 = sadd.s32 %s36, 1
      %s38 = scalar_select %p35, %s36, %s37
      %p41 = pneg %p35
      %p42 = scmp.eq.s32.totalorder %s12, 3
      %p43 = por %p41, %p42
      %p44 = scmp.ne.s32.totalorder %s36, %s39
      %p45 = scmp.eq.s32.totalorder %s12, 0
      %p46 = por %p44, %p45
      %p47 = scmp.ne.s32.totalorder %s36, %s39
      %p48 = scmp.eq.s32.totalorder %s17, 3
      %p49 = por %p47, %p48
      %p50 = scmp.ne.s32.totalorder %s39, %s40
      %p51 = scmp.eq.s32.totalorder %s17, 0
      %p52 = por %p50, %p51
      %p53 = scmp.ne.s32.totalorder %s39, %s40
      %p54 = scmp.eq.s32.totalorder %s18, 3
      %p55 = por %p53, %p54
      %p57 = scmp.ne.s32.totalorder %s40, %s56
      %p58 = scmp.eq.s32.totalorder %s18, 0
      %p59 = por %p57, %p58
      %s60 = ssub.s32 %s19, %s31
      %s61 = ssub.s32 %s20, %s27
      %s62 = sor.u32 %s60, %s61
      %p63 = scmp.eq.s32.totalorder %s62, 0
      %s65 = sadd.s32 %s64, 1
      %s66 = scalar_select %p63, %s64, %s65
      %p69 = pneg %p63
      %p70 = scmp.eq.s32.totalorder %s12, 3
      %p71 = por %p69, %p70
      %p72 = scmp.ne.s32.totalorder %s64, %s67
      %p73 = scmp.eq.s32.totalorder %s12, 0
      %p74 = por %p72, %p73
      %p75 = scmp.ne.s32.totalorder %s64, %s67
      %p76 = scmp.eq.s32.totalorder %s17, 3
      %p77 = por %p75, %p76
      %p78 = scmp.ne.s32.totalorder %s67, %s68
      %p79 = scmp.eq.s32.totalorder %s17, 0
      %p80 = por %p78, %p79
      %p81 = scmp.ne.s32.totalorder %s67, %s68
      %p82 = scmp.eq.s32.totalorder %s18, 3
      %p83 = por %p81, %p82
      %p85 = scmp.ne.s32.totalorder %s68, %s84
      %p86 = scmp.eq.s32.totalorder %s18, 0
      %p87 = por %p85, %p86
      %s89 = sadd.s32 %s88, 1
      %p92 = scmp.eq.s32.totalorder %s12, 3
      %p93 = scmp.ne.s32.totalorder %s88, %s90
      %p94 = scmp.eq.s32.totalorder %s12, 0
      %p95 = por %p93, %p94
      %p96 = scmp.ne.s32.totalorder %s88, %s90
      %p97 = scmp.eq.s32.totalorder %s17, 3
      %p98 = por %p96, %p97
      %p99 = scmp.ne.s32.totalorder %s90, %s91
      %p100 = scmp.eq.s32.totalorder %s17, 0
      %p101 = por %p99, %p100
      %p102 = scmp.ne.s32.totalorder %s90, %s91
      %p103 = scmp.eq.s32.totalorder %s18, 3
      %p104 = por %p102, %p103
      %p106 = scmp.ne.s32.totalorder %s91, %s105
      %p107 = scmp.eq.s32.totalorder %s18, 0
      %p108 = por %p106, %p107
      %s110 = sadd.s32 %s109, 1
      %p113 = scmp.eq.s32.totalorder %s12, 3
      %p114 = scmp.ne.s32.totalorder %s109, %s111
      %p115 = scmp.eq.s32.totalorder %s12, 0
      %p116 = por %p114, %p115
      %p117 = scmp.ne.s32.totalorder %s109, %s111
      %p118 = scmp.eq.s32.totalorder %s17, 3
      %p119 = por %p117, %p118
      %p120 = scmp.ne.s32.totalorder %s111, %s112
      %p121 = scmp.eq.s32.totalorder %s17, 0
      %p122 = por %p120, %p121
      %p123 = scmp.ne.s32.totalorder %s111, %s112
      %p124 = scmp.eq.s32.totalorder %s18, 3
      %p125 = por %p123, %p124
      %p127 = scmp.ne.s32.totalorder %s112, %s126
      %p128 = scmp.eq.s32.totalorder %s18, 0
      %p129 = por %p127, %p128
      %s131 = sadd.s32 %s130, 1
      %p134 = scmp.eq.s32.totalorder %s12, 3
      %p135 = scmp.ne.s32.totalorder %s130, %s132
      %p136 = scmp.eq.s32.totalorder %s12, 0
      %p137 = por %p135, %p136
      %p138 = scmp.ne.s32.totalorder %s130, %s132
      %p139 = scmp.eq.s32.totalorder %s17, 3
      %p140 = por %p138, %p139
      %p141 = scmp.ne.s32.totalorder %s132, %s133
      %p142 = scmp.eq.s32.totalorder %s17, 0
      %p143 = por %p141, %p142
      %p144 = scmp.ne.s32.totalorder %s132, %s133
      %p145 = scmp.eq.s32.totalorder %s18, 3
      %p146 = por %p144, %p145
      %p148 = scmp.ne.s32.totalorder %s133, %s147
      %p149 = scmp.eq.s32.totalorder %s18, 0
      %p150 = por %p148, %p149
      %s152 = sadd.s32 %s151, 1
      %p155 = scmp.eq.s32.totalorder %s12, 3
      %p156 = scmp.ne.s32.totalorder %s151, %s153
      %p157 = scmp.eq.s32.totalorder %s12, 0
      %p158 = por %p156, %p157
      %p159 = scmp.ne.s32.totalorder %s151, %s153
      %p160 = scmp.eq.s32.totalorder %s17, 3
      %p161 = por %p159, %p160
      %p162 = scmp.ne.s32.totalorder %s153, %s154
      %p163 = scmp.eq.s32.totalorder %s17, 0
      %p164 = por %p162, %p163
      %p165 = scmp.ne.s32.totalorder %s153, %s154
      %p166 = scmp.eq.s32.totalorder %s18, 3
      %p167 = por %p165, %p166
      %p169 = scmp.ne.s32.totalorder %s154, %s168
      %p170 = scmp.eq.s32.totalorder %s18, 0
      %p171 = por %p169, %p170
      %s172 = ssub.s32 %s19, %s31
      %s173 = ssub.s32 %s20, %s27
      %s174 = sor.u32 %s172, %s173
      %p175 = scmp.eq.s32.totalorder %s174, 0
      %s177 = sadd.s32 %s176, 1
      %s178 = scalar_select %p175, %s176, %s177
      %p181 = pneg %p175
      %p182 = scmp.eq.s32.totalorder %s12, 3
      %p183 = por %p181, %p182
      %p184 = scmp.ne.s32.totalorder %s176, %s179
      %p185 = scmp.eq.s32.totalorder %s12, 0
      %p186 = por %p184, %p185
      %p187 = scmp.ne.s32.totalorder %s176, %s179
      %p188 = scmp.eq.s32.totalorder %s17, 3
      %p189 = por %p187, %p188
      %p190 = scmp.ne.s32.totalorder %s179, %s180
      %p191 = scmp.eq.s32.totalorder %s17, 0
      %p192 = por %p190, %p191
      %p193 = scmp.ne.s32.totalorder %s179, %s180
      %p194 = scmp.eq.s32.totalorder %s18, 3
      %p195 = por %p193, %p194
      %p197 = scmp.ne.s32.totalorder %s180, %s196
      %p198 = scmp.eq.s32.totalorder %s18, 0
      %p199 = por %p197, %p198
      %p200 = scmp.le.s32.totalorder 1, %s12
      %p201 = scmp.lt.s32.totalorder %s12, 5
      %p202 = pnand %p200, %p201
      %p203 = pneg %p202
      // Predicated region
      $region9: #{modulator_v3.1} parent=5 // pred_check
        _
      $region10: #{modulator_v3.1} parent=5 // pred_check_branch
        %205 = sbr.rel (%p202) target = $region12
      $region11: #{modulator_v3.1} parent=5 // pred_region
        %s206 = ssub.s32 %s12, 1
        // Predicated region
        $region13: #{modulator_v3.1} parent=11 // pred_check
          %p207 = pneg %p101
        $region14: #{modulator_v3.1} parent=11 // pred_check_branch
          %209 = sbr.rel (%p207) target = $region16
        $region15: #{modulator_v3.1} parent=11 // pred_region
          _
        $region16: #{modulator_v3.1} parent=11 // pred_fallthru
          _
        // Predicated region
        $region17: #{modulator_v3.1} parent=11 // pred_check
          %p210 = pneg %p122
        $region18: #{modulator_v3.1} parent=11 // pred_check_branch
          %212 = sbr.rel (%p210) target = $region20
        $region19: #{modulator_v3.1} parent=11 // pred_region
          _
        $region20: #{modulator_v3.1} parent=11 // pred_fallthru
          _
        // Predicated region
        $region21: #{modulator_v3.1} parent=11 // pred_check
          %p213 = pneg %p143
        $region22: #{modulator_v3.1} parent=11 // pred_check_branch
          %215 = sbr.rel (%p213) target = $region24
        $region23: #{modulator_v3.1} parent=11 // pred_region
          _
        $region24: #{modulator_v3.1} parent=11 // pred_fallthru
          _
        // Predicated region
        $region25: #{modulator_v3.1} parent=11 // pred_check
          %p216 = pneg %p164
        $region26: #{modulator_v3.1} parent=11 // pred_check_branch
          %218 = sbr.rel (%p216) target = $region28
        $region27: #{modulator_v3.1} parent=11 // pred_region
          _
        $region28: #{modulator_v3.1} parent=11 // pred_fallthru
          _
      $region12: #{modulator_v3.1} parent=5 // pred_fallthru
        _
      %p219 = scmp.lt.s32.totalorder %s12, 4
      // Predicated region
      $region29: #{modulator_v3.1} parent=5 // pred_check
        %p220 = pneg %p219
      $region30: #{modulator_v3.1} parent=5 // pred_check_branch
        %222 = sbr.rel (%p220) target = $region32
      $region31: #{modulator_v3.1} parent=5 // pred_region
        // Predicated region
        $region33: #{modulator_v3.1} parent=31 // pred_check
          %p223 = pneg %p46
        $region34: #{modulator_v3.1} parent=31 // pred_check_branch
          %225 = sbr.rel (%p223) target = $region36
        $region35: #{modulator_v3.1} parent=31 // pred_region
          %s226 = sand.u32 %s36, 1
          %s227 = sand.u32 %s36, 1
          %s228 = smul.addr %s227, 32
          %s229 = scalar_lea.vmem [#allocation2], %s228
          %s230 = smul.addr %s19, 8
          %s231 = sadd.s32 %s20, %s230
          %s232 = smul.addr %s231, 8
          %s233 = scalar_lea.vmem %s0, %s232
          // Predicated region
          $region37: #{modulator_v3.1} parent=35 // pred_check
            _
          $region38: #{modulator_v3.1} parent=35 // pred_check_branch
            %235 = sbr.rel (0) target = $region40
          $region39: #{modulator_v3.1} parent=35 // pred_region
            // Predicated region
            $region41: #{modulator_v3.1} parent=39 // pred_check
              _
            $region42: #{modulator_v3.1} parent=39 // pred_check_branch
              %237 = sbr.rel (0) target = $region44
            $region43: #{modulator_v3.1} parent=39 // pred_region
              // Predicated region
              $region56: #{modulator_v3.1} parent=43 // pred_check
                _
              $region57: #{modulator_v3.1} parent=43 // pred_check_branch
                %259 = sbr.rel (0) target = $region59
              $region58: #{modulator_v3.1} parent=43 // pred_region
                loop: start=0, step=1, limit=1
                $region60: #{modulator_v3.1} parent=58 // loop_pre_header
                  _
                $region61: #{modulator_v3.1} parent=58 // loop_header
                  %s261 = sphi 0, %s265
                  %p262 = scmp.ge.s32.totalorder %s261, 1
                  %s266 = sphi %s233, %s233
                  %s267 = sphi %s229, %s229
                $region62: #{modulator_v3.1} parent=58 // loop_header_branch
                  %264 = sbr.rel (%p262) target = $region66
                $region63: #{modulator_v3.1} parent=58 // loop_body
                  %v268 = vld [vmem:[%s266] sm:$0xff]
                  %269 = vst [vmem:[%s267] sm:$0xff] %v268
                  %v270 = vld [vmem:[%s266 + $0x10] sm:$0xff]
                  %271 = vst [vmem:[%s267 + $0x8] sm:$0xff] %v270
                  %v272 = vld [vmem:[%s266 + $0x20] sm:$0xff]
                  %273 = vst [vmem:[%s267 + $0x10] sm:$0xff] %v272
                  %v274 = vld [vmem:[%s266 + $0x30] sm:$0xff]
                  %275 = vst [vmem:[%s267 + $0x18] sm:$0xff] %v274
                $region64: #{modulator_v3.1} parent=58 // loop_footer
                  %s265 = sadd.s32 1, %s261
                $region65: #{modulator_v3.1} parent=58 // loop_footer_branch
                  %260 = sbr.rel target = $region61
                $region66: #{modulator_v3.1} parent=58 // loop_exit
                  _
              $region59: #{modulator_v3.1} parent=43 // pred_fallthru
                _
              // Predicated region
              $region67: #{modulator_v3.1} parent=43 // pred_check
                _
              $region68: #{modulator_v3.1} parent=43 // pred_check_branch
                %277 = sbr.rel target = $region70
              $region69: #{modulator_v3.1} parent=43 // pred_region
                _
              $region70: #{modulator_v3.1} parent=43 // pred_fallthru
                _
            $region44: #{modulator_v3.1} parent=39 // pred_fallthru
              _
            // Predicated region
            $region45: #{modulator_v3.1} parent=39 // pred_check
              _
            $region46: #{modulator_v3.1} parent=39 // pred_check_branch
              %239 = sbr.rel target = $region48
            $region47: #{modulator_v3.1} parent=39 // pred_region
              %s241 = ssub.s32 256, 1
              loop: start=0, step=1, limit=1
              $region49: #{modulator_v3.1} parent=47 // loop_pre_header
                _
              $region50: #{modulator_v3.1} parent=47 // loop_header
                %s243 = sphi 0, %s247
                %p244 = scmp.ge.s32.totalorder %s243, 1
                %s248 = sphi %s233, %s233
                %s249 = sphi %s229, %s229
              $region51: #{modulator_v3.1} parent=47 // loop_header_branch
                %246 = sbr.rel (%p244) target = $region55
              $region52: #{modulator_v3.1} parent=47 // loop_body
                %v250 = vld [vmem:[%s248] sm:%s241]
                %251 = vst [vmem:[%s249] sm:%s241] %v250
                %v252 = vld [vmem:[%s248 + $0x10] sm:%s241]
                %253 = vst [vmem:[%s249 + $0x8] sm:%s241] %v252
                %v254 = vld [vmem:[%s248 + $0x20] sm:%s241]
                %255 = vst [vmem:[%s249 + $0x10] sm:%s241] %v254
                %v256 = vld [vmem:[%s248 + $0x30] sm:%s241]
                %257 = vst [vmem:[%s249 + $0x18] sm:%s241] %v256
              $region53: #{modulator_v3.1} parent=47 // loop_footer
                %s247 = sadd.s32 1, %s243
              $region54: #{modulator_v3.1} parent=47 // loop_footer_branch
                %242 = sbr.rel target = $region50
              $region55: #{modulator_v3.1} parent=47 // loop_exit
                _
            $region48: #{modulator_v3.1} parent=39 // pred_fallthru
              _
          $region40: #{modulator_v3.1} parent=35 // pred_fallthru
            _
          %278 = vnop
        $region36: #{modulator_v3.1} parent=31 // pred_fallthru
          _
        // Predicated region
        $region71: #{modulator_v3.1} parent=31 // pred_check
          %p279 = pneg %p74
        $region72: #{modulator_v3.1} parent=31 // pred_check_branch
          %281 = sbr.rel (%p279) target = $region74
        $region73: #{modulator_v3.1} parent=31 // pred_region
          %s282 = sand.u32 %s64, 1
          %s283 = sand.u32 %s64, 1
          %s284 = smul.addr %s283, 32
          %s285 = scalar_lea.vmem [#allocation3], %s284
          %s286 = smul.addr %s19, 8
          %s287 = sadd.s32 %s20, %s286
          %s288 = smul.addr %s287, 8
          %s289 = scalar_lea.vmem %s1, %s288
          // Predicated region
          $region75: #{modulator_v3.1} parent=73 // pred_check
            _
          $region76: #{modulator_v3.1} parent=73 // pred_check_branch
            %291 = sbr.rel (0) target = $region78
          $region77: #{modulator_v3.1} parent=73 // pred_region
            // Predicated region
            $region79: #{modulator_v3.1} parent=77 // pred_check
              _
            $region80: #{modulator_v3.1} parent=77 // pred_check_branch
              %293 = sbr.rel (0) target = $region82
            $region81: #{modulator_v3.1} parent=77 // pred_region
              // Predicated region
              $region94: #{modulator_v3.1} parent=81 // pred_check
                _
              $region95: #{modulator_v3.1} parent=81 // pred_check_branch
                %315 = sbr.rel (0) target = $region97
              $region96: #{modulator_v3.1} parent=81 // pred_region
                loop: start=0, step=1, limit=1
                $region98: #{modulator_v3.1} parent=96 // loop_pre_header
                  _
                $region99: #{modulator_v3.1} parent=96 // loop_header
                  %s317 = sphi 0, %s321
                  %p318 = scmp.ge.s32.totalorder %s317, 1
                  %s322 = sphi %s289, %s289
                  %s323 = sphi %s285, %s285
                $region100: #{modulator_v3.1} parent=96 // loop_header_branch
                  %320 = sbr.rel (%p318) target = $region104
                $region101: #{modulator_v3.1} parent=96 // loop_body
                  %v324 = vld [vmem:[%s322] sm:$0xff]
                  %325 = vst [vmem:[%s323] sm:$0xff] %v324
                  %v326 = vld [vmem:[%s322 + $0x10] sm:$0xff]
                  %327 = vst [vmem:[%s323 + $0x8] sm:$0xff] %v326
                  %v328 = vld [vmem:[%s322 + $0x20] sm:$0xff]
                  %329 = vst [vmem:[%s323 + $0x10] sm:$0xff] %v328
                  %v330 = vld [vmem:[%s322 + $0x30] sm:$0xff]
                  %331 = vst [vmem:[%s323 + $0x18] sm:$0xff] %v330
                $region102: #{modulator_v3.1} parent=96 // loop_footer
                  %s321 = sadd.s32 1, %s317
                $region103: #{modulator_v3.1} parent=96 // loop_footer_branch
                  %316 = sbr.rel target = $region99
                $region104: #{modulator_v3.1} parent=96 // loop_exit
                  _
              $region97: #{modulator_v3.1} parent=81 // pred_fallthru
                _
              // Predicated region
              $region105: #{modulator_v3.1} parent=81 // pred_check
                _
              $region106: #{modulator_v3.1} parent=81 // pred_check_branch
                %333 = sbr.rel target = $region108
              $region107: #{modulator_v3.1} parent=81 // pred_region
                _
              $region108: #{modulator_v3.1} parent=81 // pred_fallthru
                _
            $region82: #{modulator_v3.1} parent=77 // pred_fallthru
              _
            // Predicated region
            $region83: #{modulator_v3.1} parent=77 // pred_check
              _
            $region84: #{modulator_v3.1} parent=77 // pred_check_branch
              %295 = sbr.rel target = $region86
            $region85: #{modulator_v3.1} parent=77 // pred_region
              %s297 = ssub.s32 256, 1
              loop: start=0, step=1, limit=1
              $region87: #{modulator_v3.1} parent=85 // loop_pre_header
                _
              $region88: #{modulator_v3.1} parent=85 // loop_header
                %s299 = sphi 0, %s303
                %p300 = scmp.ge.s32.totalorder %s299, 1
                %s304 = sphi %s289, %s289
                %s305 = sphi %s285, %s285
              $region89: #{modulator_v3.1} parent=85 // loop_header_branch
                %302 = sbr.rel (%p300) target = $region93
              $region90: #{modulator_v3.1} parent=85 // loop_body
                %v306 = vld [vmem:[%s304] sm:%s297]
                %307 = vst [vmem:[%s305] sm:%s297] %v306
                %v308 = vld [vmem:[%s304 + $0x10] sm:%s297]
                %309 = vst [vmem:[%s305 + $0x8] sm:%s297] %v308
                %v310 = vld [vmem:[%s304 + $0x20] sm:%s297]
                %311 = vst [vmem:[%s305 + $0x10] sm:%s297] %v310
                %v312 = vld [vmem:[%s304 + $0x30] sm:%s297]
                %313 = vst [vmem:[%s305 + $0x18] sm:%s297] %v312
              $region91: #{modulator_v3.1} parent=85 // loop_footer
                %s303 = sadd.s32 1, %s299
              $region92: #{modulator_v3.1} parent=85 // loop_footer_branch
                %298 = sbr.rel target = $region88
              $region93: #{modulator_v3.1} parent=85 // loop_exit
                _
            $region86: #{modulator_v3.1} parent=77 // pred_fallthru
              _
          $region78: #{modulator_v3.1} parent=73 // pred_fallthru
            _
          %334 = vnop
        $region74: #{modulator_v3.1} parent=31 // pred_fallthru
          _
      $region32: #{modulator_v3.1} parent=5 // pred_fallthru
        _
      %p335 = scmp.le.s32.totalorder 1, %s12
      %p336 = scmp.lt.s32.totalorder %s12, 5
      %p337 = pnand %p335, %p336
      %p338 = pneg %p337
      // Predicated region
      $region109: #{modulator_v3.1} parent=5 // pred_check
        _
      $region110: #{modulator_v3.1} parent=5 // pred_check_branch
        %340 = sbr.rel (%p337) target = $region112
      $region111: #{modulator_v3.1} parent=5 // pred_region
        %s341 = ssub.s32 %s12, 1
        %s342 = sand.u32 %s39, 1
        %s343 = sand.u32 %s39, 1
        %s344 = smul.addr %s343, 32
        %s345 = scalar_lea.vmem [#allocation2], %s344
        // Predicated region
        $region113: #{modulator_v3.1} parent=111 // pred_check
          %p346 = pneg %p52
        $region114: #{modulator_v3.1} parent=111 // pred_check_branch
          %348 = sbr.rel (%p346) target = $region116
        $region115: #{modulator_v3.1} parent=111 // pred_region
          _
        $region116: #{modulator_v3.1} parent=111 // pred_fallthru
          _
        %s349 = sand.u32 %s67, 1
        %s350 = sand.u32 %s67, 1
        %s351 = smul.addr %s350, 32
        %s352 = scalar_lea.vmem [#allocation3], %s351
        // Predicated region
        $region117: #{modulator_v3.1} parent=111 // pred_check
          %p353 = pneg %p80
        $region118: #{modulator_v3.1} parent=111 // pred_check_branch
          %355 = sbr.rel (%p353) target = $region120
        $region119: #{modulator_v3.1} parent=111 // pred_region
          _
        $region120: #{modulator_v3.1} parent=111 // pred_fallthru
          _
        %s356 = sand.u32 %s39, 1
        %s357 = sand.u32 %s39, 1
        %s358 = smul.addr %s357, 32
        %s359 = scalar_lea.vmem [#allocation2], %s358
        %p360 = pneg %p52
        %p361 = pneg %p49
        %s362 = sand.u32 %s67, 1
        %s363 = sand.u32 %s67, 1
        %s364 = smul.addr %s363, 32
        %s365 = scalar_lea.vmem [#allocation3], %s364
        %p366 = pneg %p80
        %p367 = pneg %p77
        %p368 = pneg %p101
        %p369 = pneg %p98
        %p370 = pneg %p122
        %p371 = pneg %p119
        %p372 = pneg %p143
        %p373 = pneg %p140
        %p374 = pneg %p164
        %p375 = pneg %p161
        %p376 = pneg %p192
        %p377 = pneg %p189
        %s378 = sand.u32 %s179, 1
        %s379 = sand.u32 %s179, 1
        %s380 = smul.addr %s379, 32
        %s381 = scalar_lea.vmem [#allocation4], %s380
        %v382 = vld [vmem:[%s352] sm:$0xff]
        %v383 = vld [vmem:[%s352 + $0x8] sm:$0xff]
        %v384 = vld [vmem:[%s352 + $0x10] sm:$0xff]
        %v385 = vld [vmem:[%s352 + $0x18] sm:$0xff]
        %v386 = vld [vmem:[%s2] sm:$0xff]
        %v387 = vld [vmem:[%s2 + $0x8] sm:$0xff]
        %v388 = vld [vmem:[%s2 + $0x10] sm:$0xff]
        %v389 = vld [vmem:[%s2 + $0x18] sm:$0xff]
        %v390 = vld [vmem:[%s3] sm:$0xff]
        %v391 = vld [vmem:[%s3 + $0x8] sm:$0xff]
        %v392 = vld [vmem:[%s3 + $0x10] sm:$0xff]
        %v393 = vld [vmem:[%s3 + $0x18] sm:$0xff]
        %395 = vset.pattern.permute.xlu0 0
        %396 = vperm.xlu0 %395, %v390
        %v397 = vpop.permute.xlu0 %396
        %400 = vset.pattern.permute.xlu0 0
        %401 = vperm.xlu0 %400, %v391
        %v402 = vpop.permute.xlu0 %401
        %405 = vset.pattern.permute.xlu0 0
        %406 = vperm.xlu0 %405, %v392
        %v407 = vpop.permute.xlu0 %406
        %410 = vset.pattern.permute.xlu0 0
        %411 = vperm.xlu0 %410, %v393
        %v412 = vpop.permute.xlu0 %411
        %vm414 = vcmask 261120
        %v416 = vsel %vm414, %v386, 0
        %v419 = vsel %vm414, %v387, 0
        %v422 = vsel %vm414, %v388, 0
        %v425 = vsel %vm414, %v389, 0
        %427 = vmatpush.msra.mxu0 0.0
        %428 = vmatpush.msra.mxu0 0.0
        %429 = vmatpush.msra.mxu0 0.0
        %430 = vmatpush.msra.mxu0 0.0
        %431 = vmatpush.msra.mxu0 0.0
        %432 = vmatpush.msra.mxu0 0.0
        %433 = vmatpush.msra.mxu0 0.0
        %434 = vmatpush.msra.mxu0 0.0
        %435 = vmatpush.msra.mxu0 0.0
        %436 = vmatpush.msra.mxu0 0.0
        %437 = vmatpush.msra.mxu0 0.0
        %438 = vmatpush.msra.mxu0 0.0
        %439 = vmatpush.msra.mxu0 %v385
        %440 = vmatpush.msra.mxu0 %v384
        %441 = vmatpush.msra.mxu0 %v383
        %442 = vmatpush.msra.mxu0 %v382
        %443 = vmatmul.f32.gmra.mxu0 %v416
        %v444 = vpop.f32.mrf.mxu0
        %v445 = vadd.f32 %v397, %v444
        %446 = vmatmul.f32.gmra.mxu0 %v419
        %v447 = vpop.f32.mrf.mxu0
        %v448 = vadd.f32 %v402, %v447
        %449 = vmatmul.f32.gmra.mxu0 %v422
        %v450 = vpop.f32.mrf.mxu0
        %v451 = vadd.f32 %v407, %v450
        %452 = vmatmul.f32.gmra.mxu0 %v425
        %v453 = vpop.f32.mrf.mxu0
        %v454 = vadd.f32 %v412, %v453
        %455 = vdwg.mxu0
        %v456 = vmax.f32 %v445, 0.0
        %v457 = vmax.f32 %v448, 0.0
        %v458 = vmax.f32 %v451, 0.0
        %v459 = vmax.f32 %v454, 0.0
        %v460 = vld [vmem:[%s4] sm:$0xff]
        %v461 = vld [vmem:[%s4 + $0x8] sm:$0xff]
        %v462 = vld [vmem:[%s4 + $0x10] sm:$0xff]
        %v463 = vld [vmem:[%s4 + $0x18] sm:$0xff]
        %v464 = vld [vmem:[%s5] sm:$0xff]
        %v465 = vld [vmem:[%s5 + $0x8] sm:$0xff]
        %v466 = vld [vmem:[%s5 + $0x10] sm:$0xff]
        %v467 = vld [vmem:[%s5 + $0x18] sm:$0xff]
        %469 = vset.pattern.permute.xlu0 0
        %470 = vperm.xlu0 %469, %v464
        %v471 = vpop.permute.xlu0 %470
        %474 = vset.pattern.permute.xlu0 0
        %475 = vperm.xlu0 %474, %v465
        %v476 = vpop.permute.xlu0 %475
        %479 = vset.pattern.permute.xlu0 0
        %480 = vperm.xlu0 %479, %v466
        %v481 = vpop.permute.xlu0 %480
        %484 = vset.pattern.permute.xlu0 0
        %485 = vperm.xlu0 %484, %v467
        %v486 = vpop.permute.xlu0 %485
        %v489 = vsel %vm414, %v460, 0
        %v492 = vsel %vm414, %v461, 0
        %v495 = vsel %vm414, %v462, 0
        %v498 = vsel %vm414, %v463, 0
        %500 = vmatpush.msra.mxu0 0.0
        %501 = vmatpush.msra.mxu0 0.0
        %502 = vmatpush.msra.mxu0 0.0
        %503 = vmatpush.msra.mxu0 0.0
        %504 = vmatpush.msra.mxu0 0.0
        %505 = vmatpush.msra.mxu0 0.0
        %506 = vmatpush.msra.mxu0 0.0
        %507 = vmatpush.msra.mxu0 0.0
        %508 = vmatpush.msra.mxu0 0.0
        %509 = vmatpush.msra.mxu0 0.0
        %510 = vmatpush.msra.mxu0 0.0
        %511 = vmatpush.msra.mxu0 0.0
        %512 = vmatpush.msra.mxu0 %v459
        %513 = vmatpush.msra.mxu0 %v458
        %514 = vmatpush.msra.mxu0 %v457
        %515 = vmatpush.msra.mxu0 %v456
        %516 = vmatmul.f32.gmra.mxu0 %v489
        %v517 = vpop.f32.mrf.mxu0
        %v518 = vadd.f32 %v471, %v517
        %519 = vmatmul.f32.gmra.mxu0 %v492
        %v520 = vpop.f32.mrf.mxu0
        %v521 = vadd.f32 %v476, %v520
        %522 = vmatmul.f32.gmra.mxu0 %v495
        %v523 = vpop.f32.mrf.mxu0
        %v524 = vadd.f32 %v481, %v523
        %525 = vmatmul.f32.gmra.mxu0 %v498
        %v526 = vpop.f32.mrf.mxu0
        %v527 = vadd.f32 %v486, %v526
        %528 = vdwg.mxu0
        %v529 = vld [vmem:[%s345] sm:$0xff]
        %v530 = vld [vmem:[%s345 + $0x8] sm:$0xff]
        %v531 = vld [vmem:[%s345 + $0x10] sm:$0xff]
        %v532 = vld [vmem:[%s345 + $0x18] sm:$0xff]
        %v533 = vmul.f32 %v529, %v518
        %v534 = vmul.f32 %v530, %v521
        %v535 = vmul.f32 %v531, %v524
        %v536 = vmul.f32 %v532, %v527
        %537 = vst [vmem:[%s381] sm:$0xff] %v533
        %538 = vst [vmem:[%s381 + $0x8] sm:$0xff] %v534
        %539 = vst [vmem:[%s381 + $0x10] sm:$0xff] %v535
        %540 = vst [vmem:[%s381 + $0x18] sm:$0xff] %v536
        %s541 = sand.u32 %s179, 1
        %s542 = sand.u32 %s179, 1
        %s543 = smul.addr %s542, 32
        %s544 = scalar_lea.vmem [#allocation4], %s543
        // Predicated region
        $region121: #{modulator_v3.1} parent=111 // pred_check
          %p545 = pneg %p189
        $region122: #{modulator_v3.1} parent=111 // pred_check_branch
          %547 = sbr.rel (%p545) target = $region124
        $region123: #{modulator_v3.1} parent=111 // pred_region
          %s548 = smul.addr %s21, 8
          %s549 = sadd.s32 %s22, %s548
          %s550 = smul.addr %s549, 8
          %s551 = scalar_lea.vmem %s6, %s550
          // Predicated region
          $region125: #{modulator_v3.1} parent=123 // pred_check
            _
          $region126: #{modulator_v3.1} parent=123 // pred_check_branch
            %553 = sbr.rel (0) target = $region128
          $region127: #{modulator_v3.1} parent=123 // pred_region
            // Predicated region
            $region129: #{modulator_v3.1} parent=127 // pred_check
              _
            $region130: #{modulator_v3.1} parent=127 // pred_check_branch
              %555 = sbr.rel (0) target = $region132
            $region131: #{modulator_v3.1} parent=127 // pred_region
              // Predicated region
              $region144: #{modulator_v3.1} parent=131 // pred_check
                _
              $region145: #{modulator_v3.1} parent=131 // pred_check_branch
                %577 = sbr.rel (0) target = $region147
              $region146: #{modulator_v3.1} parent=131 // pred_region
                loop: start=0, step=1, limit=1
                $region148: #{modulator_v3.1} parent=146 // loop_pre_header
                  _
                $region149: #{modulator_v3.1} parent=146 // loop_header
                  %s579 = sphi 0, %s583
                  %p580 = scmp.ge.s32.totalorder %s579, 1
                  %s584 = sphi %s544, %s544
                  %s585 = sphi %s551, %s551
                $region150: #{modulator_v3.1} parent=146 // loop_header_branch
                  %582 = sbr.rel (%p580) target = $region154
                $region151: #{modulator_v3.1} parent=146 // loop_body
                  %v586 = vld [vmem:[%s584] sm:$0xff]
                  %587 = vst [vmem:[%s585] sm:$0xff] %v586
                  %v588 = vld [vmem:[%s584 + $0x8] sm:$0xff]
                  %589 = vst [vmem:[%s585 + $0x10] sm:$0xff] %v588
                  %v590 = vld [vmem:[%s584 + $0x10] sm:$0xff]
                  %591 = vst [vmem:[%s585 + $0x20] sm:$0xff] %v590
                  %v592 = vld [vmem:[%s584 + $0x18] sm:$0xff]
                  %593 = vst [vmem:[%s585 + $0x30] sm:$0xff] %v592
                $region152: #{modulator_v3.1} parent=146 // loop_footer
                  %s583 = sadd.s32 1, %s579
                $region153: #{modulator_v3.1} parent=146 // loop_footer_branch
                  %578 = sbr.rel target = $region149
                $region154: #{modulator_v3.1} parent=146 // loop_exit
                  _
              $region147: #{modulator_v3.1} parent=131 // pred_fallthru
                _
              // Predicated region
              $region155: #{modulator_v3.1} parent=131 // pred_check
                _
              $region156: #{modulator_v3.1} parent=131 // pred_check_branch
                %595 = sbr.rel target = $region158
              $region157: #{modulator_v3.1} parent=131 // pred_region
                _
              $region158: #{modulator_v3.1} parent=131 // pred_fallthru
                _
            $region132: #{modulator_v3.1} parent=127 // pred_fallthru
              _
            // Predicated region
            $region133: #{modulator_v3.1} parent=127 // pred_check
              _
            $region134: #{modulator_v3.1} parent=127 // pred_check_branch
              %557 = sbr.rel target = $region136
            $region135: #{modulator_v3.1} parent=127 // pred_region
              %s559 = ssub.s32 256, 1
              loop: start=0, step=1, limit=1
              $region137: #{modulator_v3.1} parent=135 // loop_pre_header
                _
              $region138: #{modulator_v3.1} parent=135 // loop_header
                %s561 = sphi 0, %s565
                %p562 = scmp.ge.s32.totalorder %s561, 1
                %s566 = sphi %s544, %s544
                %s567 = sphi %s551, %s551
              $region139: #{modulator_v3.1} parent=135 // loop_header_branch
                %564 = sbr.rel (%p562) target = $region143
              $region140: #{modulator_v3.1} parent=135 // loop_body
                %v568 = vld [vmem:[%s566] sm:%s559]
                %569 = vst [vmem:[%s567] sm:%s559] %v568
                %v570 = vld [vmem:[%s566 + $0x8] sm:%s559]
                %571 = vst [vmem:[%s567 + $0x10] sm:%s559] %v570
                %v572 = vld [vmem:[%s566 + $0x10] sm:%s559]
                %573 = vst [vmem:[%s567 + $0x20] sm:%s559] %v572
                %v574 = vld [vmem:[%s566 + $0x18] sm:%s559]
                %575 = vst [vmem:[%s567 + $0x30] sm:%s559] %v574
              $region141: #{modulator_v3.1} parent=135 // loop_footer
                %s565 = sadd.s32 1, %s561
              $region142: #{modulator_v3.1} parent=135 // loop_footer_branch
                %560 = sbr.rel target = $region138
              $region143: #{modulator_v3.1} parent=135 // loop_exit
                _
            $region136: #{modulator_v3.1} parent=127 // pred_fallthru
              _
          $region128: #{modulator_v3.1} parent=123 // pred_fallthru
            _
          %596 = vnop
        $region124: #{modulator_v3.1} parent=111 // pred_fallthru
          _
      $region112: #{modulator_v3.1} parent=5 // pred_fallthru
        _
      %p597 = scmp.le.s32.totalorder 2, %s12
      // Predicated region
      $region159: #{modulator_v3.1} parent=5 // pred_check
        %p598 = pneg %p597
      $region160: #{modulator_v3.1} parent=5 // pred_check_branch
        %600 = sbr.rel (%p598) target = $region162
      $region161: #{modulator_v3.1} parent=5 // pred_region
        %s601 = ssub.s32 %s12, 2
        // Predicated region
        $region163: #{modulator_v3.1} parent=161 // pred_check
          %p602 = pneg %p195
        $region164: #{modulator_v3.1} parent=161 // pred_check_branch
          %604 = sbr.rel (%p602) target = $region166
        $region165: #{modulator_v3.1} parent=161 // pred_region
          %s605 = sand.u32 %s180, 1
          %s606 = sand.u32 %s180, 1
          %s607 = smul.addr %s606, 32
          %s608 = scalar_lea.vmem [#allocation4], %s607
        $region166: #{modulator_v3.1} parent=161 // pred_fallthru
          _
      $region162: #{modulator_v3.1} parent=5 // pred_fallthru
        _
    $region6: #{modulator_v3.1} parent=1 // loop_footer
      %s16 = sadd.s32 1, %s12
    $region7: #{modulator_v3.1} parent=1 // loop_footer_branch
      %11 = sbr.rel target = $region3
    $region8: #{modulator_v3.1} parent=1 // loop_exit
      _

</llo_original>
